<compile_context>
chip_gen: v6e
topology: v6e:2x2x1
jax: 0.10.0
libtpu: 0.0.40
codegen_flags: <defaults>
</compile_context>

<pallas_src>
import jax
import jax.numpy as jnp
from jax import lax
from jax.experimental import pallas as pl
from jax.experimental.pallas import tpu as pltpu

LANES = 128


def _round_up(x, m):
    return ((x + m - 1) // m) * m


def _cdiv(a, b):
    return (a + b - 1) // b


def _vmem_capacity_bytes():
    try:
        cap = int(pltpu.get_tpu_info().vmem_capacity_bytes)
        if cap > 0:
            return cap
    except Exception:
        pass
    return 64 * 1024 * 1024            # conservative default (v7x per-TC VMEM)


def _tile_vmem_bytes(T, Th, K, Cx, Cpo, Lxp, cd_size, out_size):
    resident_x = 2 * Lxp * Cx * 4                       # double-buffered input block
    out_buf = 2 * T * Cpo * out_size                    # double-buffered output block
    weights = 2 * ((K * Cx * Cpo + K * Cpo * Cpo + Cx * Cpo) * cd_size
                   + 5 * Cpo * 4)
    interm = (Th * K * Cx * cd_size                     # conv1 im2col
              + Th * Cpo * (4 + cd_size)                # conv1 out (f32) + cast
              + T * K * Cpo * cd_size                   # conv2 im2col
              + 3 * T * Cpo * 4)                        # conv2 out / residual / epilogue
    return resident_x + out_buf + weights + int(1.5 * interm)


def _plan_tiles(Lout, R, K, Cx, Cpo, cd_size, out_size, tile_rows):
    cap = _vmem_capacity_bytes()
    budget = int(cap * 0.55)
    if tile_rows is not None:
        T = max(8, _round_up(min(int(tile_rows), _round_up(Lout, 8)), 8))
    else:
        T = max(8, min(1024, _round_up(Lout, 8)))
    while True:
        nT = _cdiv(Lout, T)
        Lp = nT * T
        Th = _round_up(T + R, 8)
        Lxp = (nT - 1) * T + R + Th
        est = _tile_vmem_bytes(T, Th, K, Cx, Cpo, Lxp, cd_size, out_size)
        if tile_rows is not None or est <= budget or T <= 64:
            break
        T = max(64, _round_up(T // 2, 8))
    vmem_limit = int(min(max(2 * est, 32 * 1024 * 1024, est + (8 << 20)),
                         int(cap * 0.9)))
    return T, nT, Lp, Th, Lxp, vmem_limit


def _make_kernel(*, K, d, pad, T, Th, L, L1, L2, Cx, Cpo,
                 has_downsample, compute_dtype):
    cd = compute_dtype

    def kernel(*refs):
        if has_downsample:
            (x_ref, w1_ref, w2_ref, s1_ref, b1_ref, s2_ref, b2_ref,
             wd_ref, bd_ref, o_ref) = refs
        else:
            (x_ref, w1_ref, w2_ref, s1_ref, b1_ref, s2_ref, b2_ref,
             o_ref) = refs

        t0 = pl.program_id(1) * T              # first output row of this tile
        t0a = pl.multiple_of(t0, 8)            # aligned-start hint for slices

        # ---- conv1: single im2col matmul (contraction = K*Cx). Tap k covers
        #      padded-x rows [t0 + k*d, t0 + k*d + Th); padded-x row r is
        #      original row r - 2*pad (zeros outside [0, L)). ----
        taps = [x_ref[0, pl.ds(t0a + k * d, Th), :].astype(cd) for k in range(K)]
        a1 = taps[0] if K == 1 else jnp.concatenate(taps, axis=1)     # (Th, K*Cx)
        h = jnp.dot(a1, w1_ref[...], preferred_element_type=jnp.float32)
        h = jnp.maximum(h * s1_ref[...] + b1_ref[...], 0.0)           # bn1 + relu
        # Rows whose global conv1 index falls outside [0, L1) are conv2's
        # zero padding -> force them to exactly zero before conv2.
        q = lax.broadcasted_iota(jnp.int32, (Th, 1), 0)
        gh = t0 - pad + q
        h = jnp.where((gh >= 0) & (gh < L1), h, 0.0).astype(cd)
        # dropout(p=0.2) is identity in eval mode.

        # ---- conv2: single im2col matmul (contraction = K*Cpo) ----
        taps2 = [h[k * d:k * d + T, :] for k in range(K)]
        a2 = taps2[0] if K == 1 else jnp.concatenate(taps2, axis=1)   # (T, K*Cpo)
        y2 = jnp.dot(a2, w2_ref[...], preferred_element_type=jnp.float32)
        y2 = y2 * s2_ref[...] + b2_ref[...]                           # bn2
        u = lax.broadcasted_iota(jnp.int32, (T, 1), 0)
        m = t0 + u                                                    # global out row
        y2 = jnp.where(m < L2, y2, 0.0)        # rows >= L2 are zero-padded

        # ---- residual path ----
        if has_downsample:
            xr = x_ref[0, pl.ds(t0a + 2 * pad, T), :].astype(cd)      # (T, Cx)
            res = jnp.dot(xr, wd_ref[...], preferred_element_type=jnp.float32)
            res = jnp.where(m < L, res + bd_ref[...], 0.0)
        else:
            # Identity skip kept in f32 -> exact even in bf16 compute mode.
            xr = x_ref[0, pl.ds(t0a + 2 * pad, T), :].astype(jnp.float32)
            if Cx < Cpo:
                xr = jnp.concatenate(
                    [xr, jnp.zeros((T, Cpo - Cx), jnp.float32)], axis=1)
            res = xr

        o_ref[0] = jnp.maximum(y2 + res, 0.0).astype(o_ref.dtype)

    return kernel


def residual_block_forward(x_blc, params, *, kernel_size, dilation,
                           compute_dtype=jnp.bfloat16, in_channels=None,
                           keep_padded_channels=False, tile_rows=None):
    """Inference forward of ResidualBlock on (B, L, C) channels-last input.

    `in_channels` gives the true channel count when `x_blc` carries trailing
    zero lane-padding produced by a previous block run with
    keep_padded_channels=True (the extra channels must be zeros).
    """
    B, L, Cx = x_blc.shape
    Cin = int(in_channels) if in_channels is not None else Cx
    K, d = int(kernel_size), int(dilation)
    R = (K - 1) * d
    pad = R // 2
    Cout = params["w1"].shape[2]
    has_downsample = Cin != Cout

    L1 = L + 2 * pad - R                # length after conv1
    L2 = L1 + 2 * pad - R               # length after conv2
    Lout = max(L2, L)                   # == L (L2 <= L always)

    Cpo = _round_up(Cout, LANES)
    cd = compute_dtype
    cd_size = jnp.dtype(cd).itemsize
    out_size = jnp.dtype(x_blc.dtype).itemsize

    T, nT, Lp, Th, Lxp, vmem_limit = _plan_tiles(
        Lout, R, K, Cx, Cpo, cd_size, out_size, tile_rows)

    # Host-side zero halo along L (true channel width -> negligible HBM cost).
    x_padded = jnp.pad(x_blc, ((0, 0), (2 * pad, Lxp - L - 2 * pad), (0, 0)))

    # Fold conv biases + eval-mode BatchNorm into per-channel scale/shift.
    eps = 1e-5
    s1 = params["gamma1"] / jnp.sqrt(params["var1"] + eps)
    b1 = (params["bias1"] - params["mean1"]) * s1 + params["beta1"]
    s2 = params["gamma2"] / jnp.sqrt(params["var2"] + eps)
    b2 = (params["bias2"] - params["mean2"]) * s2 + params["beta2"]

    def pad_vec(v):                     # (Cout,) -> (1, Cpo) f32
        return jnp.pad(v.astype(jnp.float32), (0, Cpo - Cout)).reshape(1, Cpo)

    # im2col weights: only OUTPUT lanes are padded to 128; contraction stays
    # at its true width.
    w1p = jnp.pad(params["w1"].astype(jnp.float32),
                  ((0, 0), (0, Cx - Cin), (0, Cpo - Cout)))
    w1p = w1p.reshape(K * Cx, Cpo).astype(cd)
    w2p = jnp.pad(params["w2"].astype(jnp.float32),
                  ((0, 0), (0, Cpo - Cout), (0, Cpo - Cout)))
    w2p = w2p.reshape(K * Cpo, Cpo).astype(cd)

    inputs = [x_padded, w1p, w2p,
              pad_vec(s1), pad_vec(b1), pad_vec(s2), pad_vec(b2)]
    in_specs = [
        # Whole padded activation stays resident across the L-tile axis (its
        # block index is constant along t), at true channel width.
        pl.BlockSpec((1, Lxp, Cx), lambda b, t: (b, 0, 0)),
        pl.BlockSpec((K * Cx, Cpo), lambda b, t: (0, 0)),
        pl.BlockSpec((K * Cpo, Cpo), lambda b, t: (0, 0)),
        pl.BlockSpec((1, Cpo), lambda b, t: (0, 0)),
        pl.BlockSpec((1, Cpo), lambda b, t: (0, 0)),
        pl.BlockSpec((1, Cpo), lambda b, t: (0, 0)),
        pl.BlockSpec((1, Cpo), lambda b, t: (0, 0)),
    ]
    if has_downsample:
        wdp = jnp.pad(params["wd"].astype(jnp.float32),
                      ((0, Cx - Cin), (0, Cpo - Cout))).astype(cd)
        inputs += [wdp, pad_vec(params["bd"])]
        in_specs += [pl.BlockSpec((Cx, Cpo), lambda b, t: (0, 0)),
                     pl.BlockSpec((1, Cpo), lambda b, t: (0, 0))]

    kernel = _make_kernel(K=K, d=d, pad=pad, T=T, Th=Th, L=L, L1=L1, L2=L2,
                          Cx=Cx, Cpo=Cpo, has_downsample=has_downsample,
                          compute_dtype=cd)

    out = pl.pallas_call(
        kernel,
        out_shape=jax.ShapeDtypeStruct((B, Lp, Cpo), x_blc.dtype),
        grid_spec=pltpu.PrefetchScalarGridSpec(
            num_scalar_prefetch=0,
            grid=(B, nT),
            in_specs=in_specs,
            out_specs=pl.BlockSpec((1, T, Cpo), lambda b, t: (b, t, 0)),
        ),
        compiler_params=pltpu.CompilerParams(
            dimension_semantics=("parallel", "parallel"),
            vmem_limit_bytes=vmem_limit),
    )(*inputs)

    out = out[:, :Lout, :]
    if not keep_padded_channels:
        out = out[..., :Cout]
    return out


def reference_forward(x_blc, params, *, kernel_size, dilation):
    """Pure-JAX (f32) reference of the same eval-mode forward, channels-last."""
    K, d = kernel_size, dilation
    pad = (K - 1) * d // 2
    eps = 1e-5

    def conv1d(x, w, b):                       # x (B,L,C), w (K,Cin,Cout)
        _, Lx, _ = x.shape
        Lo = Lx + 2 * pad - d * (K - 1)
        xp = jnp.pad(x, ((0, 0), (pad, pad), (0, 0)))
        acc = jnp.zeros((x.shape[0], Lo, w.shape[2]), jnp.float32)
        for k in range(K):
            acc = acc + jnp.einsum("blc,cd->bld", xp[:, k * d:k * d + Lo, :],
                                   w[k], preferred_element_type=jnp.float32)
        return acc + b

    def bn(z, g, be, m, v):
        return g * (z - m) / jnp.sqrt(v + eps) + be

    out = conv1d(x_blc, params["w1"], params["bias1"])
    out = jnp.maximum(bn(out, params["gamma1"], params["beta1"],
                         params["mean1"], params["var1"]), 0.0)
    out = conv1d(out, params["w2"], params["bias2"])
    out = bn(out, params["gamma2"], params["beta2"],
             params["mean2"], params["var2"])
    res = x_blc
    if "wd" in params:
        res = jnp.einsum("blc,cd->bld", x_blc, params["wd"],
                         preferred_element_type=jnp.float32) + params["bd"]
    Lo, Lr = out.shape[1], res.shape[1]
    if Lo > Lr:
        res = jnp.pad(res, ((0, 0), (0, Lo - Lr), (0, 0)))
    elif Lr > Lo:
        out = jnp.pad(out, ((0, 0), (0, Lr - Lo), (0, 0)))
    return jnp.maximum(out + res, 0.0)


def _make_params(key, Cin, Cout, K):
    ks = jax.random.split(key, 16)
    p = {
        "w1": jax.random.normal(ks[0], (K, Cin, Cout), jnp.float32) * 0.2,
        "bias1": jax.random.normal(ks[1], (Cout,), jnp.float32) * 0.1,
        "w2": jax.random.normal(ks[2], (K, Cout, Cout), jnp.float32) * 0.2,
        "bias2": jax.random.normal(ks[3], (Cout,), jnp.float32) * 0.1,
        "gamma1": 1.0 + 0.1 * jax.random.normal(ks[4], (Cout,), jnp.float32),
        "beta1": 0.1 * jax.random.normal(ks[5], (Cout,), jnp.float32),
        "mean1": 0.1 * jax.random.normal(ks[6], (Cout,), jnp.float32),
        "var1": 0.5 + jnp.abs(jax.random.normal(ks[7], (Cout,), jnp.float32)) * 0.5,
        "gamma2": 1.0 + 0.1 * jax.random.normal(ks[8], (Cout,), jnp.float32),
        "beta2": 0.1 * jax.random.normal(ks[9], (Cout,), jnp.float32),
        "mean2": 0.1 * jax.random.normal(ks[10], (Cout,), jnp.float32),
        "var2": 0.5 + jnp.abs(jax.random.normal(ks[11], (Cout,), jnp.float32)) * 0.5,
    }
    if Cin != Cout:
        p["wd"] = jax.random.normal(ks[12], (Cin, Cout), jnp.float32) * 0.2
        p["bd"] = jax.random.normal(ks[13], (Cout,), jnp.float32) * 0.1
    return p


def _run_case(name, key, *, B, Cin, Cout, L, K, d, compute_dtype, atol, rtol,
              tile_rows=None):
    kx, kp = jax.random.split(key)
    params = _make_params(kp, Cin, Cout, K)
    x = jax.random.normal(kx, (B, L, Cin), jnp.float32)   # channels-last
    out = residual_block_forward(x, params, kernel_size=K, dilation=d,
                                 compute_dtype=compute_dtype,
                                 tile_rows=tile_rows)
    out = jax.block_until_ready(out)
    ref = jax.block_until_ready(
        reference_forward(x, params, kernel_size=K, dilation=d))
    assert out.shape == ref.shape, (name, out.shape, ref.shape)
    err = float(jnp.max(jnp.abs(out - ref)))
    assert jnp.allclose(out, ref, atol=atol, rtol=rtol), (name, err)


if __name__ == "__main__":
    root = jax.random.PRNGKey(0)
    k = jax.random.split(root, 6)

    # Primary config (PyTorch layout (B=2, Cin=4, L=16) -> channels-last),
    # K=3, dilation=2.  bf16 MXU inputs with f32 accumulation -> loose tol;
    # the f32 run below is the tight numerical check of the same structure.
    _run_case("bf16_downsample", k[0], B=2, Cin=4, Cout=8, L=16, K=3, d=2,
              compute_dtype=jnp.bfloat16, atol=8e-2, rtol=8e-2)
    _run_case("f32_downsample", k[1], B=2, Cin=4, Cout=8, L=16, K=3, d=2,
              compute_dtype=jnp.float32, atol=1e-4, rtol=1e-4)
    # Odd receptive field (conv output shorter than residual -> tail padding),
    # identity skip (Cin == Cout), L not a multiple of 8.
    _run_case("f32_identity_odd", k[2], B=1, Cin=8, Cout=8, L=21, K=2, d=3,
              compute_dtype=jnp.float32, atol=1e-4, rtol=1e-4)
    # Multi-tile path: small forced L tile so conv halos cross tile boundaries.
    _run_case("f32_multitile", k[3], B=1, Cin=6, Cout=10, L=40, K=3, d=3,
              compute_dtype=jnp.float32, atol=1e-4, rtol=1e-4, tile_rows=16)

    # Two stacked blocks chained in the lane-padded channel layout
    # (keep_padded_channels=True -> no per-block channel-slice HBM pass).
    kx, kp1, kp2 = jax.random.split(k[4], 3)
    x = jax.random.normal(kx, (2, 24, 4), jnp.float32)
    p1 = _make_params(kp1, 4, 8, 3)
    p2 = _make_params(kp2, 8, 8, 3)
    y1 = residual_block_forward(x, p1, kernel_size=3, dilation=2,
                                compute_dtype=jnp.float32,
                                keep_padded_channels=True)
    y2 = residual_block_forward(y1, p2, kernel_size=3, dilation=2,
                                compute_dtype=jnp.float32, in_channels=8)
    y2 = jax.block_until_ready(y2)
    r1 = reference_forward(x, p1, kernel_size=3, dilation=2)
    r2 = reference_forward(r1, p2, kernel_size=3, dilation=2)
    assert y2.shape == r2.shape, (y2.shape, r2.shape)
    assert jnp.allclose(y2, r2, atol=1e-4, rtol=1e-4), (
        float(jnp.max(jnp.abs(y2 - r2))))

    print("KERNEL_OK")
</pallas_src>

<mosaic_0001>
module attributes {stable_mosaic.version = 11 : i64} {
  func.func @kernel(%arg0: i32, %arg1: i32, %arg2: memref<1x28x4xf32, #tpu.memory_space<vmem>>, %arg3: memref<12x128xbf16, #tpu.memory_space<vmem>>, %arg4: memref<384x128xbf16, #tpu.memory_space<vmem>>, %arg5: memref<1x128xf32, #tpu.memory_space<vmem>>, %arg6: memref<1x128xf32, #tpu.memory_space<vmem>>, %arg7: memref<1x128xf32, #tpu.memory_space<vmem>>, %arg8: memref<1x128xf32, #tpu.memory_space<vmem>>, %arg9: memref<4x128xbf16, #tpu.memory_space<vmem>>, %arg10: memref<1x128xf32, #tpu.memory_space<vmem>>, %arg11: memref<1x16x128xf32, #tpu.memory_space<vmem>>) attributes {dimension_semantics = [#tpu.dimension_semantics<parallel>, #tpu.dimension_semantics<parallel>], iteration_bounds = array<i64: 2, 1>, scalar_prefetch = 0 : i64, scratch_operands = 0 : i64, tpu.core_type = #tpu.core_type<tc>, window_params = [{transform_indices = @transform_0, window_bounds = array<i64: 1, 28, 4>}, {pipeline_mode = #tpu.pipeline_mode<synchronous>, transform_indices = @transform_1, window_bounds = array<i64: 12, 128>}, {pipeline_mode = #tpu.pipeline_mode<synchronous>, transform_indices = @transform_2, window_bounds = array<i64: 384, 128>}, {pipeline_mode = #tpu.pipeline_mode<synchronous>, transform_indices = @transform_3, window_bounds = array<i64: 1, 128>}, {pipeline_mode = #tpu.pipeline_mode<synchronous>, transform_indices = @transform_4, window_bounds = array<i64: 1, 128>}, {pipeline_mode = #tpu.pipeline_mode<synchronous>, transform_indices = @transform_5, window_bounds = array<i64: 1, 128>}, {pipeline_mode = #tpu.pipeline_mode<synchronous>, transform_indices = @transform_6, window_bounds = array<i64: 1, 128>}, {pipeline_mode = #tpu.pipeline_mode<synchronous>, transform_indices = @transform_7, window_bounds = array<i64: 4, 128>}, {pipeline_mode = #tpu.pipeline_mode<synchronous>, transform_indices = @transform_8, window_bounds = array<i64: 1, 128>}, {transform_indices = @transform_9, window_bounds = array<i64: 1, 16, 128>}]} {
    %c16_i32 = arith.constant 16 : i32
    %0 = arith.muli %arg1, %c16_i32 : i32
    %1 = tpu.assume_multiple %0, 8 : i32
    %c0_i32 = arith.constant 0 : i32
    %2 = arith.addi %1, %c0_i32 : i32
    %c0 = arith.constant 0 : index
    %3 = arith.index_cast %2 : i32 to index
    %c0_0 = arith.constant 0 : index
    %4 = vector.load %arg2[%c0, %3, %c0_0] : memref<1x28x4xf32, #tpu.memory_space<vmem>>, vector<1x24x4xf32>
    %5 = vector.shape_cast %4 : vector<1x24x4xf32> to vector<24x4xf32>
    %6 = arith.truncf %5 : vector<24x4xf32> to vector<24x4xbf16>
    %c2_i32 = arith.constant 2 : i32
    %7 = arith.addi %1, %c2_i32 : i32
    %c0_1 = arith.constant 0 : index
    %8 = arith.index_cast %7 : i32 to index
    %c0_2 = arith.constant 0 : index
    %9 = vector.load %arg2[%c0_1, %8, %c0_2] : memref<1x28x4xf32, #tpu.memory_space<vmem>>, vector<1x24x4xf32>
    %10 = vector.shape_cast %9 : vector<1x24x4xf32> to vector<24x4xf32>
    %11 = arith.truncf %10 : vector<24x4xf32> to vector<24x4xbf16>
    %c4_i32 = arith.constant 4 : i32
    %12 = arith.addi %1, %c4_i32 : i32
    %c0_3 = arith.constant 0 : index
    %13 = arith.index_cast %12 : i32 to index
    %c0_4 = arith.constant 0 : index
    %14 = vector.load %arg2[%c0_3, %13, %c0_4] : memref<1x28x4xf32, #tpu.memory_space<vmem>>, vector<1x24x4xf32>
    %15 = vector.shape_cast %14 : vector<1x24x4xf32> to vector<24x4xf32>
    %16 = arith.truncf %15 : vector<24x4xf32> to vector<24x4xbf16>
    %17 = tpu.concatenate %6, %11, %16 in 1 : vector<24x4xbf16>, vector<24x4xbf16>, vector<24x4xbf16> -> vector<24x12xbf16>
    %c0_5 = arith.constant 0 : index
    %c0_6 = arith.constant 0 : index
    %18 = vector.load %arg3[%c0_5, %c0_6] : memref<12x128xbf16, #tpu.memory_space<vmem>>, vector<12x128xbf16>
    %cst = arith.constant dense<0.000000e+00> : vector<24x128xf32>
    %19 = tpu.matmul %17, %18, %cst {dimension_numbers = #tpu.dot_dimension_numbers<[1], [0], [0], [1], [0, 0, 1, 1], [], []>} : vector<24x12xbf16>, vector<12x128xbf16>, vector<24x128xf32> -> vector<24x128xf32>
    %c0_7 = arith.constant 0 : index
    %c0_8 = arith.constant 0 : index
    %20 = vector.load %arg5[%c0_7, %c0_8] : memref<1x128xf32, #tpu.memory_space<vmem>>, vector<1x128xf32>
    %21 = vector.broadcast %20 : vector<1x128xf32> to vector<24x128xf32>
    %22 = arith.mulf %19, %21 : vector<24x128xf32>
    %c0_9 = arith.constant 0 : index
    %c0_10 = arith.constant 0 : index
    %23 = vector.load %arg6[%c0_9, %c0_10] : memref<1x128xf32, #tpu.memory_space<vmem>>, vector<1x128xf32>
    %24 = vector.broadcast %23 : vector<1x128xf32> to vector<24x128xf32>
    %25 = arith.addf %22, %24 : vector<24x128xf32>
    %cst_11 = arith.constant 0.000000e+00 : f32
    %26 = vector.broadcast %cst_11 : f32 to vector<24x128xf32>
    %27 = arith.maximumf %25, %26 : vector<24x128xf32>
    %28 = tpu.iota {dimensions = array<i32: 0>} : vector<24x1xi32>
    %c2_i32_12 = arith.constant 2 : i32
    %29 = arith.subi %0, %c2_i32_12 : i32
    %30 = vector.broadcast %29 : i32 to vector<24x1xi32>
    %31 = arith.addi %30, %28 : vector<24x1xi32>
    %c0_i32_13 = arith.constant 0 : i32
    %32 = vector.broadcast %c0_i32_13 : i32 to vector<24x1xi32>
    %33 = arith.cmpi sge, %31, %32 : vector<24x1xi32>
    %c16_i32_14 = arith.constant 16 : i32
    %34 = vector.broadcast %c16_i32_14 : i32 to vector<24x1xi32>
    %35 = arith.cmpi slt, %31, %34 : vector<24x1xi32>
    %36 = arith.andi %33, %35 : vector<24x1xi1>
    %cst_15 = arith.constant 0.000000e+00 : f32
    %37 = vector.shape_cast %36 : vector<24x1xi1> to vector<24x1xi1>
    %38 = vector.broadcast %37 : vector<24x1xi1> to vector<24x128xi1>
    %39 = vector.broadcast %cst_15 : f32 to vector<24x128xf32>
    %40 = arith.select %38, %27, %39 : vector<24x128xi1>, vector<24x128xf32>
    %41 = arith.truncf %40 : vector<24x128xf32> to vector<24x128xbf16>
    %42 = vector.extract_strided_slice %41 {offsets = [0, 0], sizes = [16, 128], strides = [1, 1]} : vector<24x128xbf16> to vector<16x128xbf16>
    %43 = vector.extract_strided_slice %41 {offsets = [2, 0], sizes = [16, 128], strides = [1, 1]} : vector<24x128xbf16> to vector<16x128xbf16>
    %44 = vector.extract_strided_slice %41 {offsets = [4, 0], sizes = [16, 128], strides = [1, 1]} : vector<24x128xbf16> to vector<16x128xbf16>
    %45 = tpu.concatenate %42, %43, %44 in 1 : vector<16x128xbf16>, vector<16x128xbf16>, vector<16x128xbf16> -> vector<16x384xbf16>
    %c0_16 = arith.constant 0 : index
    %c0_17 = arith.constant 0 : index
    %46 = vector.load %arg4[%c0_16, %c0_17] : memref<384x128xbf16, #tpu.memory_space<vmem>>, vector<384x128xbf16>
    %cst_18 = arith.constant dense<0.000000e+00> : vector<16x128xf32>
    %47 = tpu.matmul %45, %46, %cst_18 {dimension_numbers = #tpu.dot_dimension_numbers<[1], [0], [0], [1], [0, 0, 1, 1], [], []>} : vector<16x384xbf16>, vector<384x128xbf16>, vector<16x128xf32> -> vector<16x128xf32>
    %c0_19 = arith.constant 0 : index
    %c0_20 = arith.constant 0 : index
    %48 = vector.load %arg7[%c0_19, %c0_20] : memref<1x128xf32, #tpu.memory_space<vmem>>, vector<1x128xf32>
    %49 = vector.broadcast %48 : vector<1x128xf32> to vector<16x128xf32>
    %50 = arith.mulf %47, %49 : vector<16x128xf32>
    %c0_21 = arith.constant 0 : index
    %c0_22 = arith.constant 0 : index
    %51 = vector.load %arg8[%c0_21, %c0_22] : memref<1x128xf32, #tpu.memory_space<vmem>>, vector<1x128xf32>
    %52 = vector.broadcast %51 : vector<1x128xf32> to vector<16x128xf32>
    %53 = arith.addf %50, %52 : vector<16x128xf32>
    %54 = tpu.iota {dimensions = array<i32: 0>} : vector<16x1xi32>
    %55 = vector.broadcast %0 : i32 to vector<16x1xi32>
    %56 = arith.addi %55, %54 : vector<16x1xi32>
    %c16_i32_23 = arith.constant 16 : i32
    %57 = vector.broadcast %c16_i32_23 : i32 to vector<16x1xi32>
    %58 = arith.cmpi slt, %56, %57 : vector<16x1xi32>
    %cst_24 = arith.constant 0.000000e+00 : f32
    %59 = vector.shape_cast %58 : vector<16x1xi1> to vector<16x1xi1>
    %60 = vector.broadcast %59 : vector<16x1xi1> to vector<16x128xi1>
    %61 = vector.broadcast %cst_24 : f32 to vector<16x128xf32>
    %62 = arith.select %60, %53, %61 : vector<16x128xi1>, vector<16x128xf32>
    %c4_i32_25 = arith.constant 4 : i32
    %63 = arith.addi %1, %c4_i32_25 : i32
    %c0_26 = arith.constant 0 : index
    %64 = arith.index_cast %63 : i32 to index
    %c0_27 = arith.constant 0 : index
    %65 = vector.load %arg2[%c0_26, %64, %c0_27] : memref<1x28x4xf32, #tpu.memory_space<vmem>>, vector<1x16x4xf32>
    %66 = vector.shape_cast %65 : vector<1x16x4xf32> to vector<16x4xf32>
    %67 = arith.truncf %66 : vector<16x4xf32> to vector<16x4xbf16>
    %c0_28 = arith.constant 0 : index
    %c0_29 = arith.constant 0 : index
    %68 = vector.load %arg9[%c0_28, %c0_29] : memref<4x128xbf16, #tpu.memory_space<vmem>>, vector<4x128xbf16>
    %cst_30 = arith.constant dense<0.000000e+00> : vector<16x128xf32>
    %69 = tpu.matmul %67, %68, %cst_30 {dimension_numbers = #tpu.dot_dimension_numbers<[1], [0], [0], [1], [0, 0, 1, 1], [], []>} : vector<16x4xbf16>, vector<4x128xbf16>, vector<16x128xf32> -> vector<16x128xf32>
    %c16_i32_31 = arith.constant 16 : i32
    %70 = vector.broadcast %c16_i32_31 : i32 to vector<16x1xi32>
    %71 = arith.cmpi slt, %56, %70 : vector<16x1xi32>
    %c0_32 = arith.constant 0 : index
    %c0_33 = arith.constant 0 : index
    %72 = vector.load %arg10[%c0_32, %c0_33] : memref<1x128xf32, #tpu.memory_space<vmem>>, vector<1x128xf32>
    %73 = vector.broadcast %72 : vector<1x128xf32> to vector<16x128xf32>
    %74 = arith.addf %69, %73 : vector<16x128xf32>
    %cst_34 = arith.constant 0.000000e+00 : f32
    %75 = vector.shape_cast %71 : vector<16x1xi1> to vector<16x1xi1>
    %76 = vector.broadcast %75 : vector<16x1xi1> to vector<16x128xi1>
    %77 = vector.broadcast %cst_34 : f32 to vector<16x128xf32>
    %78 = arith.select %76, %74, %77 : vector<16x128xi1>, vector<16x128xf32>
    %79 = arith.addf %62, %78 : vector<16x128xf32>
    %cst_35 = arith.constant 0.000000e+00 : f32
    %80 = vector.broadcast %cst_35 : f32 to vector<16x128xf32>
    %81 = arith.maximumf %79, %80 : vector<16x128xf32>
    %c0_36 = arith.constant 0 : index
    %c0_37 = arith.constant 0 : index
    %c0_38 = arith.constant 0 : index
    %82 = vector.load %arg11[%c0_36, %c0_37, %c0_38] : memref<1x16x128xf32, #tpu.memory_space<vmem>>, vector<1x16x128xf32>
    %83 = vector.shape_cast %82 : vector<1x16x128xf32> to vector<16x128xf32>
    %84 = vector.shape_cast %81 : vector<16x128xf32> to vector<1x16x128xf32>
    tpu.vector_store %arg11[%c0_36, %c0_37, %c0_38], %84 {strides = array<i32>} : memref<1x16x128xf32, #tpu.memory_space<vmem>>, vector<1x16x128xf32>,
    return
  }
  func.func @transform_0(%arg0: i32, %arg1: i32) -> (i32, i32, i32) {
    %c0_i32 = arith.constant 0 : i32
    %c0_i32_0 = arith.constant 0 : i32
    %c0_i32_1 = arith.constant 0 : i32
    return %arg0, %c0_i32, %c0_i32_0 : i32, i32, i32
  }
  func.func @transform_1(%arg0: i32, %arg1: i32) -> (i32, i32) {
    %c0_i32 = arith.constant 0 : i32
    %c0_i32_0 = arith.constant 0 : i32
    %c0_i32_1 = arith.constant 0 : i32
    return %c0_i32, %c0_i32_0 : i32, i32
  }
  func.func @transform_2(%arg0: i32, %arg1: i32) -> (i32, i32) {
    %c0_i32 = arith.constant 0 : i32
    %c0_i32_0 = arith.constant 0 : i32
    %c0_i32_1 = arith.constant 0 : i32
    return %c0_i32, %c0_i32_0 : i32, i32
  }
  func.func @transform_3(%arg0: i32, %arg1: i32) -> (i32, i32) {
    %c0_i32 = arith.constant 0 : i32
    %c0_i32_0 = arith.constant 0 : i32
    %c0_i32_1 = arith.constant 0 : i32
    return %c0_i32, %c0_i32_0 : i32, i32
  }
  func.func @transform_4(%arg0: i32, %arg1: i32) -> (i32, i32) {
    %c0_i32 = arith.constant 0 : i32
    %c0_i32_0 = arith.constant 0 : i32
    %c0_i32_1 = arith.constant 0 : i32
    return %c0_i32, %c0_i32_0 : i32, i32
  }
  func.func @transform_5(%arg0: i32, %arg1: i32) -> (i32, i32) {
    %c0_i32 = arith.constant 0 : i32
    %c0_i32_0 = arith.constant 0 : i32
    %c0_i32_1 = arith.constant 0 : i32
    return %c0_i32, %c0_i32_0 : i32, i32
  }
  func.func @transform_6(%arg0: i32, %arg1: i32) -> (i32, i32) {
    %c0_i32 = arith.constant 0 : i32
    %c0_i32_0 = arith.constant 0 : i32
    %c0_i32_1 = arith.constant 0 : i32
    return %c0_i32, %c0_i32_0 : i32, i32
  }
  func.func @transform_7(%arg0: i32, %arg1: i32) -> (i32, i32) {
    %c0_i32 = arith.constant 0 : i32
    %c0_i32_0 = arith.constant 0 : i32
    %c0_i32_1 = arith.constant 0 : i32
    return %c0_i32, %c0_i32_0 : i32, i32
  }
  func.func @transform_8(%arg0: i32, %arg1: i32) -> (i32, i32) {
    %c0_i32 = arith.constant 0 : i32
    %c0_i32_0 = arith.constant 0 : i32
    %c0_i32_1 = arith.constant 0 : i32
    return %c0_i32, %c0_i32_0 : i32, i32
  }
  func.func @transform_9(%arg0: i32, %arg1: i32) -> (i32, i32, i32) {
    %c0_i32 = arith.constant 0 : i32
    %c0_i32_0 = arith.constant 0 : i32
    return %arg0, %arg1, %c0_i32 : i32, i32, i32
  }
}

</mosaic_0001>

<llo_original>
// kernel: tpu_custom_call.1
$region0: #{tpu_custom_call.1}
  #allocation0 [shape = 'u32[]', space=smem, size = 0x4, offset = 0x4, fixed_abs, tag = 'smem constant byte address 0x4 - core index']
  #allocation1 [shape = 'u32[144,128]{1,0:T(1,128)}', space=vmem, size = 0x12000, scoped, tag = 'internal scratch']
  %s0 = inlined_call_operand.vmem [shape: f32[2,28,4], index: 0, kind: input, shape index: {}]
  %s1 = inlined_call_operand.vmem [shape: bf16[12,128], index: 1, kind: input, shape index: {}]
  %s2 = inlined_call_operand.hbm [shape: bf16[384,128], index: 2, kind: input, shape index: {}]
  %s3 = inlined_call_operand.vmem [shape: f32[1,128], index: 3, kind: input, shape index: {}]
  %s4 = inlined_call_operand.vmem [shape: f32[1,128], index: 4, kind: input, shape index: {}]
  %s5 = inlined_call_operand.vmem [shape: f32[1,128], index: 5, kind: input, shape index: {}]
  %s6 = inlined_call_operand.vmem [shape: f32[1,128], index: 6, kind: input, shape index: {}]
  %s7 = inlined_call_operand.vmem [shape: bf16[4,128], index: 7, kind: input, shape index: {}]
  %s8 = inlined_call_operand.vmem [shape: f32[1,128], index: 8, kind: input, shape index: {}]
  %s9 = inlined_call_operand.hbm [shape: f32[2,16,128], index: 9, kind: output, shape index: {}]
  %s10 = sld [smem:[#allocation0]]
  $region73: #{tpu_custom_call.1} parent=0
    _
  %s12 = ssub.s32 1, %s10
  %s13 = scalar_select 0, %s12, %s10
  $region1: #{tpu_custom_call.1} parent=0
    #allocation2 [shape = 'u8[98304]{0}', space=vmem, size = 0x18000, scoped, tag = 'input window, operand 2, single buffered']
    #allocation3 [shape = 's32[2]{0}', space=sflag, size = 0x8, scoped, tag = 'scoped memory for tpu_custom_call.1']
    #allocation4 [shape = 's32[2]{0}', space=sflag, size = 0x8, scoped, tag = 'scoped memory for tpu_custom_call.1']
    #allocation5 [shape = 'u8[16384]{0}', space=vmem, size = 0x4000, scoped, tag = 'output window, operand 0']
    %14 = vsyncpa [#allocation3], 0
    %15 = vsyncpa [#allocation4], 0
    %s16 = scalar_lea.sflag [#allocation4], 1
    %17 = vsyncpa %s16, 0
    loop: start=0, step=1, limit=4
    $region2: #{tpu_custom_call.1} parent=1 // loop_pre_header
      _
    $region3: #{tpu_custom_call.1} parent=1 // loop_header
      %s19 = sphi 0, %s23
      %p20 = scmp.ge.s32.totalorder %s19, 4
      %s26 = sphi 0, %s38
      %s27 = sphi 0, %s34
      %s28 = sphi 0, %s26
      %s29 = sphi 0, %s27
      %s30 = sphi 0, %s28
      %s31 = sphi 0, %s29
      %s41 = sphi 0, %s43
      %s44 = sphi 0, %s41
      %s45 = sphi 0, %s44
      %s61 = sphi 0, %s45
      %s65 = sphi 0, %s65
      %s67 = sphi 0, %s65
      %s68 = sphi 0, %s67
      %s82 = sphi 0, %s68
      %s86 = sphi 0, %s86
      %s88 = sphi 0, %s86
      %s89 = sphi 0, %s88
      %s103 = sphi 0, %s89
      %s107 = sphi 0, %s107
      %s109 = sphi 0, %s107
      %s110 = sphi 0, %s109
      %s124 = sphi 0, %s110
      %s128 = sphi 0, %s128
      %s130 = sphi 0, %s128
      %s131 = sphi 0, %s130
      %s145 = sphi 0, %s131
      %s149 = sphi 0, %s149
      %s151 = sphi 0, %s149
      %s152 = sphi 0, %s151
      %s166 = sphi 0, %s152
      %s170 = sphi 0, %s170
      %s172 = sphi 0, %s170
      %s173 = sphi 0, %s172
      %s187 = sphi 0, %s173
      %s191 = sphi 0, %s191
      %s193 = sphi 0, %s191
      %s194 = sphi 0, %s193
      %s208 = sphi 0, %s194
      %s212 = sphi 0, %s212
      %s214 = sphi 0, %s212
      %s215 = sphi 0, %s214
      %s229 = sphi 0, %s215
      %s237 = sphi 0, %s239
      %s240 = sphi 0, %s237
      %s241 = sphi 0, %s240
      %s257 = sphi 0, %s241
    $region4: #{tpu_custom_call.1} parent=1 // loop_header_branch
      %22 = sbr.rel (%p20) target = $region8
    $region5: #{tpu_custom_call.1} parent=1 // loop_body
      %s24 = ssub.s32 %s19, 1
      %s25 = ssub.s32 %s19, 2
      %s32 = sadd.s32 1, %s27
      %p33 = scmp.ge.s32.totalorder %s32, 1
      %s34 = scalar_select %p33, 0, %s32
      %s35 = sadd.s32 1, %s26
      %s36 = scalar_select %p33, %s35, %s26
      %p37 = scmp.ge.s32.totalorder %s36, 2
      %s38 = scalar_select %p37, 0, %s36
      %s39 = ssub.s32 %s26, %s38
      %p40 = scmp.eq.s32.totalorder %s39, 0
      %s42 = sadd.s32 %s41, 1
      %s43 = scalar_select %p40, %s41, %s42
      %p46 = pneg %p40
      %p47 = scmp.eq.s32.totalorder %s19, 1
      %p48 = por %p46, %p47
      %p49 = scmp.ne.s32.totalorder %s41, %s44
      %p50 = scmp.eq.s32.totalorder %s19, 0
      %p51 = por %p49, %p50
      %p52 = scmp.ne.s32.totalorder %s41, %s44
      %p53 = scmp.eq.s32.totalorder %s24, 1
      %p54 = por %p52, %p53
      %p55 = scmp.ne.s32.totalorder %s44, %s45
      %p56 = scmp.eq.s32.totalorder %s24, 0
      %p57 = por %p55, %p56
      %p58 = scmp.ne.s32.totalorder %s44, %s45
      %p59 = scmp.eq.s32.totalorder %s25, 1
      %p60 = por %p58, %p59
      %p62 = scmp.ne.s32.totalorder %s45, %s61
      %p63 = scmp.eq.s32.totalorder %s25, 0
      %p64 = por %p62, %p63
      %s66 = sadd.s32 %s65, 1
      %p69 = scmp.eq.s32.totalorder %s19, 1
      %p70 = scmp.ne.s32.totalorder %s65, %s67
      %p71 = scmp.eq.s32.totalorder %s19, 0
      %p72 = por %p70, %p71
      %p73 = scmp.ne.s32.totalorder %s65, %s67
      %p74 = scmp.eq.s32.totalorder %s24, 1
      %p75 = por %p73, %p74
      %p76 = scmp.ne.s32.totalorder %s67, %s68
      %p77 = scmp.eq.s32.totalorder %s24, 0
      %p78 = por %p76, %p77
      %p79 = scmp.ne.s32.totalorder %s67, %s68
      %p80 = scmp.eq.s32.totalorder %s25, 1
      %p81 = por %p79, %p80
      %p83 = scmp.ne.s32.totalorder %s68, %s82
      %p84 = scmp.eq.s32.totalorder %s25, 0
      %p85 = por %p83, %p84
      %s87 = sadd.s32 %s86, 1
      %p90 = scmp.eq.s32.totalorder %s19, 1
      %p91 = scmp.ne.s32.totalorder %s86, %s88
      %p92 = scmp.eq.s32.totalorder %s19, 0
      %p93 = por %p91, %p92
      %p94 = scmp.ne.s32.totalorder %s86, %s88
      %p95 = scmp.eq.s32.totalorder %s24, 1
      %p96 = por %p94, %p95
      %p97 = scmp.ne.s32.totalorder %s88, %s89
      %p98 = scmp.eq.s32.totalorder %s24, 0
      %p99 = por %p97, %p98
      %p100 = scmp.ne.s32.totalorder %s88, %s89
      %p101 = scmp.eq.s32.totalorder %s25, 1
      %p102 = por %p100, %p101
      %p104 = scmp.ne.s32.totalorder %s89, %s103
      %p105 = scmp.eq.s32.totalorder %s25, 0
      %p106 = por %p104, %p105
      %s108 = sadd.s32 %s107, 1
      %p111 = scmp.eq.s32.totalorder %s19, 1
      %p112 = scmp.ne.s32.totalorder %s107, %s109
      %p113 = scmp.eq.s32.totalorder %s19, 0
      %p114 = por %p112, %p113
      %p115 = scmp.ne.s32.totalorder %s107, %s109
      %p116 = scmp.eq.s32.totalorder %s24, 1
      %p117 = por %p115, %p116
      %p118 = scmp.ne.s32.totalorder %s109, %s110
      %p119 = scmp.eq.s32.totalorder %s24, 0
      %p120 = por %p118, %p119
      %p121 = scmp.ne.s32.totalorder %s109, %s110
      %p122 = scmp.eq.s32.totalorder %s25, 1
      %p123 = por %p121, %p122
      %p125 = scmp.ne.s32.totalorder %s110, %s124
      %p126 = scmp.eq.s32.totalorder %s25, 0
      %p127 = por %p125, %p126
      %s129 = sadd.s32 %s128, 1
      %p132 = scmp.eq.s32.totalorder %s19, 1
      %p133 = scmp.ne.s32.totalorder %s128, %s130
      %p134 = scmp.eq.s32.totalorder %s19, 0
      %p135 = por %p133, %p134
      %p136 = scmp.ne.s32.totalorder %s128, %s130
      %p137 = scmp.eq.s32.totalorder %s24, 1
      %p138 = por %p136, %p137
      %p139 = scmp.ne.s32.totalorder %s130, %s131
      %p140 = scmp.eq.s32.totalorder %s24, 0
      %p141 = por %p139, %p140
      %p142 = scmp.ne.s32.totalorder %s130, %s131
      %p143 = scmp.eq.s32.totalorder %s25, 1
      %p144 = por %p142, %p143
      %p146 = scmp.ne.s32.totalorder %s131, %s145
      %p147 = scmp.eq.s32.totalorder %s25, 0
      %p148 = por %p146, %p147
      %s150 = sadd.s32 %s149, 1
      %p153 = scmp.eq.s32.totalorder %s19, 1
      %p154 = scmp.ne.s32.totalorder %s149, %s151
      %p155 = scmp.eq.s32.totalorder %s19, 0
      %p156 = por %p154, %p155
      %p157 = scmp.ne.s32.totalorder %s149, %s151
      %p158 = scmp.eq.s32.totalorder %s24, 1
      %p159 = por %p157, %p158
      %p160 = scmp.ne.s32.totalorder %s151, %s152
      %p161 = scmp.eq.s32.totalorder %s24, 0
      %p162 = por %p160, %p161
      %p163 = scmp.ne.s32.totalorder %s151, %s152
      %p164 = scmp.eq.s32.totalorder %s25, 1
      %p165 = por %p163, %p164
      %p167 = scmp.ne.s32.totalorder %s152, %s166
      %p168 = scmp.eq.s32.totalorder %s25, 0
      %p169 = por %p167, %p168
      %s171 = sadd.s32 %s170, 1
      %p174 = scmp.eq.s32.totalorder %s19, 1
      %p175 = scmp.ne.s32.totalorder %s170, %s172
      %p176 = scmp.eq.s32.totalorder %s19, 0
      %p177 = por %p175, %p176
      %p178 = scmp.ne.s32.totalorder %s170, %s172
      %p179 = scmp.eq.s32.totalorder %s24, 1
      %p180 = por %p178, %p179
      %p181 = scmp.ne.s32.totalorder %s172, %s173
      %p182 = scmp.eq.s32.totalorder %s24, 0
      %p183 = por %p181, %p182
      %p184 = scmp.ne.s32.totalorder %s172, %s173
      %p185 = scmp.eq.s32.totalorder %s25, 1
      %p186 = por %p184, %p185
      %p188 = scmp.ne.s32.totalorder %s173, %s187
      %p189 = scmp.eq.s32.totalorder %s25, 0
      %p190 = por %p188, %p189
      %s192 = sadd.s32 %s191, 1
      %p195 = scmp.eq.s32.totalorder %s19, 1
      %p196 = scmp.ne.s32.totalorder %s191, %s193
      %p197 = scmp.eq.s32.totalorder %s19, 0
      %p198 = por %p196, %p197
      %p199 = scmp.ne.s32.totalorder %s191, %s193
      %p200 = scmp.eq.s32.totalorder %s24, 1
      %p201 = por %p199, %p200
      %p202 = scmp.ne.s32.totalorder %s193, %s194
      %p203 = scmp.eq.s32.totalorder %s24, 0
      %p204 = por %p202, %p203
      %p205 = scmp.ne.s32.totalorder %s193, %s194
      %p206 = scmp.eq.s32.totalorder %s25, 1
      %p207 = por %p205, %p206
      %p209 = scmp.ne.s32.totalorder %s194, %s208
      %p210 = scmp.eq.s32.totalorder %s25, 0
      %p211 = por %p209, %p210
      %s213 = sadd.s32 %s212, 1
      %p216 = scmp.eq.s32.totalorder %s19, 1
      %p217 = scmp.ne.s32.totalorder %s212, %s214
      %p218 = scmp.eq.s32.totalorder %s19, 0
      %p219 = por %p217, %p218
      %p220 = scmp.ne.s32.totalorder %s212, %s214
      %p221 = scmp.eq.s32.totalorder %s24, 1
      %p222 = por %p220, %p221
      %p223 = scmp.ne.s32.totalorder %s214, %s215
      %p224 = scmp.eq.s32.totalorder %s24, 0
      %p225 = por %p223, %p224
      %p226 = scmp.ne.s32.totalorder %s214, %s215
      %p227 = scmp.eq.s32.totalorder %s25, 1
      %p228 = por %p226, %p227
      %p230 = scmp.ne.s32.totalorder %s215, %s229
      %p231 = scmp.eq.s32.totalorder %s25, 0
      %p232 = por %p230, %p231
      %s233 = ssub.s32 %s26, %s38
      %s234 = ssub.s32 %s27, %s34
      %s235 = sor.u32 %s233, %s234
      %p236 = scmp.eq.s32.totalorder %s235, 0
      %s238 = sadd.s32 %s237, 1
      %s239 = scalar_select %p236, %s237, %s238
      %p242 = pneg %p236
      %p243 = scmp.eq.s32.totalorder %s19, 1
      %p244 = por %p242, %p243
      %p245 = scmp.ne.s32.totalorder %s237, %s240
      %p246 = scmp.eq.s32.totalorder %s19, 0
      %p247 = por %p245, %p246
      %p248 = scmp.ne.s32.totalorder %s237, %s240
      %p249 = scmp.eq.s32.totalorder %s24, 1
      %p250 = por %p248, %p249
      %p251 = scmp.ne.s32.totalorder %s240, %s241
      %p252 = scmp.eq.s32.totalorder %s24, 0
      %p253 = por %p251, %p252
      %p254 = scmp.ne.s32.totalorder %s240, %s241
      %p255 = scmp.eq.s32.totalorder %s25, 1
      %p256 = por %p254, %p255
      %p258 = scmp.ne.s32.totalorder %s241, %s257
      %p259 = scmp.eq.s32.totalorder %s25, 0
      %p260 = por %p258, %p259
      %p261 = scmp.le.s32.totalorder 1, %s19
      %p262 = scmp.lt.s32.totalorder %s19, 3
      %p263 = pnand %p261, %p262
      %p264 = pneg %p263
      // Predicated region
      $region9: #{tpu_custom_call.1} parent=5 // pred_check
        _
      $region10: #{tpu_custom_call.1} parent=5 // pred_check_branch
        %266 = sbr.rel (%p263) target = $region12
      $region11: #{tpu_custom_call.1} parent=5 // pred_region
        %s267 = ssub.s32 %s19, 1
        // Predicated region
        $region13: #{tpu_custom_call.1} parent=11 // pred_check
          %p268 = pneg %p78
        $region14: #{tpu_custom_call.1} parent=11 // pred_check_branch
          %270 = sbr.rel (%p268) target = $region16
        $region15: #{tpu_custom_call.1} parent=11 // pred_region
          _
        $region16: #{tpu_custom_call.1} parent=11 // pred_fallthru
          _
        // Predicated region
        $region17: #{tpu_custom_call.1} parent=11 // pred_check
          %p271 = pneg %p99
        $region18: #{tpu_custom_call.1} parent=11 // pred_check_branch
          %273 = sbr.rel (%p271) target = $region20
        $region19: #{tpu_custom_call.1} parent=11 // pred_region
          %s275 = ssub.s32 3072, 3072
          %276 = vsyncadd [#allocation3], %s275
          %s277 = sshll.u32 [#allocation2], 4
          %s278 = int_to_ptr.vmem [resolvable:$true] %s277
          %283 = dma.hbm_to_vmem [thread:$0]  %s2, 3072, %s278, [#allocation3], 64, 64, 4
        $region20: #{tpu_custom_call.1} parent=11 // pred_fallthru
          _
        // Predicated region
        $region21: #{tpu_custom_call.1} parent=11 // pred_check
          %p284 = pneg %p120
        $region22: #{tpu_custom_call.1} parent=11 // pred_check_branch
          %286 = sbr.rel (%p284) target = $region24
        $region23: #{tpu_custom_call.1} parent=11 // pred_region
          _
        $region24: #{tpu_custom_call.1} parent=11 // pred_fallthru
          _
        // Predicated region
        $region25: #{tpu_custom_call.1} parent=11 // pred_check
          %p287 = pneg %p141
        $region26: #{tpu_custom_call.1} parent=11 // pred_check_branch
          %289 = sbr.rel (%p287) target = $region28
        $region27: #{tpu_custom_call.1} parent=11 // pred_region
          _
        $region28: #{tpu_custom_call.1} parent=11 // pred_fallthru
          _
        // Predicated region
        $region29: #{tpu_custom_call.1} parent=11 // pred_check
          %p290 = pneg %p162
        $region30: #{tpu_custom_call.1} parent=11 // pred_check_branch
          %292 = sbr.rel (%p290) target = $region32
        $region31: #{tpu_custom_call.1} parent=11 // pred_region
          _
        $region32: #{tpu_custom_call.1} parent=11 // pred_fallthru
          _
        // Predicated region
        $region33: #{tpu_custom_call.1} parent=11 // pred_check
          %p293 = pneg %p183
        $region34: #{tpu_custom_call.1} parent=11 // pred_check_branch
          %295 = sbr.rel (%p293) target = $region36
        $region35: #{tpu_custom_call.1} parent=11 // pred_region
          _
        $region36: #{tpu_custom_call.1} parent=11 // pred_fallthru
          _
        // Predicated region
        $region37: #{tpu_custom_call.1} parent=11 // pred_check
          %p296 = pneg %p204
        $region38: #{tpu_custom_call.1} parent=11 // pred_check_branch
          %298 = sbr.rel (%p296) target = $region40
        $region39: #{tpu_custom_call.1} parent=11 // pred_region
          _
        $region40: #{tpu_custom_call.1} parent=11 // pred_fallthru
          _
        // Predicated region
        $region41: #{tpu_custom_call.1} parent=11 // pred_check
          %p299 = pneg %p225
        $region42: #{tpu_custom_call.1} parent=11 // pred_check_branch
          %301 = sbr.rel (%p299) target = $region44
        $region43: #{tpu_custom_call.1} parent=11 // pred_region
          _
        $region44: #{tpu_custom_call.1} parent=11 // pred_fallthru
          _
      $region12: #{tpu_custom_call.1} parent=5 // pred_fallthru
        _
      %p302 = scmp.lt.s32.totalorder %s19, 2
      // Predicated region
      $region45: #{tpu_custom_call.1} parent=5 // pred_check
        %p303 = pneg %p302
      $region46: #{tpu_custom_call.1} parent=5 // pred_check_branch
        %305 = sbr.rel (%p303) target = $region48
      $region47: #{tpu_custom_call.1} parent=5 // pred_region
        // Predicated region
        $region49: #{tpu_custom_call.1} parent=47 // pred_check
          %p306 = pneg %p51
        $region50: #{tpu_custom_call.1} parent=47 // pred_check_branch
          %308 = sbr.rel (%p306) target = $region52
        $region51: #{tpu_custom_call.1} parent=47 // pred_region
          %p309 = scmp.lt.s32.totalorder %s26, 1
          %s310 = scalar_select %p309, %s26, 1
          %s311 = smul.addr %s310, 4
          %s312 = smul.addr %s311, 8
          %s313 = scalar_lea.vmem %s0, %s312
        $region52: #{tpu_custom_call.1} parent=47 // pred_fallthru
          _
      $region48: #{tpu_custom_call.1} parent=5 // pred_fallthru
        _
      %p314 = scmp.le.s32.totalorder 1, %s19
      %p315 = scmp.lt.s32.totalorder %s19, 3
      %p316 = pnand %p314, %p315
      %p317 = pneg %p316
      // Predicated region
      $region53: #{tpu_custom_call.1} parent=5 // pred_check
        _
      $region54: #{tpu_custom_call.1} parent=5 // pred_check_branch
        %319 = sbr.rel (%p316) target = $region56
      $region55: #{tpu_custom_call.1} parent=5 // pred_region
        %s320 = ssub.s32 %s19, 1
        // Predicated region
        $region57: #{tpu_custom_call.1} parent=55 // pred_check
          %p321 = pneg %p99
        $region58: #{tpu_custom_call.1} parent=55 // pred_check_branch
          %323 = sbr.rel (%p321) target = $region60
        $region59: #{tpu_custom_call.1} parent=55 // pred_region
          %324 = dma.done [#allocation3], 3072
        $region60: #{tpu_custom_call.1} parent=55 // pred_fallthru
          _
        %p325 = scmp.lt.s32.totalorder %s28, 1
        %s326 = scalar_select %p325, %s28, 1
        %s327 = smul.addr %s326, 4
        %s328 = smul.addr %s327, 8
        %s329 = scalar_lea.vmem %s0, %s328
        %p330 = pneg %p57
        %p331 = pneg %p54
        %p332 = pneg %p78
        %p333 = pneg %p75
        %p334 = pneg %p99
        %p335 = pneg %p96
        %p336 = pneg %p120
        %p337 = pneg %p117
        %p338 = pneg %p141
        %p339 = pneg %p138
        %p340 = pneg %p162
        %p341 = pneg %p159
        %p342 = pneg %p183
        %p343 = pneg %p180
        %p344 = pneg %p204
        %p345 = pneg %p201
        %p346 = pneg %p225
        %p347 = pneg %p222
        %p348 = pneg %p253
        %p349 = pneg %p250
        %s350 = sand.u32 %s240, 1
        %s351 = scalar_lea.sflag [#allocation4], %s350
        %s352 = sand.u32 %s240, 1
        %s353 = smul.addr %s352, 16
        %s354 = scalar_lea.vmem [#allocation5], %s353
        %p355 = scmp.lt.s32.totalorder %s28, 1
        %s356 = scalar_select %p355, %s28, 1
        %s357 = smul.addr %s356, 4
        %s358 = smul.addr %s357, 8
        %s359 = scalar_lea.vmem %s0, %s358
        %s360 = smul.u32 2, %s29
        %s362 = smul.u32 %s29, 16
        %s363 = scalar_lea.vmem %s359, %s362
        %v364 = vld [vmem:[%s363] sm:$0xff]
        %v365 = vld [vmem:[%s363 + $0x8] sm:$0xff]
        %v366 = vld [vmem:[%s363 + $0x10] sm:$0xff]
        %v367 = vpack.c.bf16 %v365, %v364
        %v368 = vpack.c.bf16 %v366, %v366
        %s369 = sadd.s32 %s362, 2
        %s370 = scalar_lea.vmem %s359, %s369
        %v371 = vld [vmem:[%s370] sm:$0xff]
        %v372 = vld [vmem:[%s370 + $0x8] sm:$0xff]
        %v373 = vld [vmem:[%s370 + $0x10] sm:$0xff]
        %v374 = vpack.c.bf16 %v372, %v371
        %v375 = vpack.c.bf16 %v373, %v373
        %s376 = sadd.s32 %s362, 4
        %s377 = scalar_lea.vmem %s359, %s376
        %v378 = vld [vmem:[%s377] sm:$0xff]
        %v379 = vld [vmem:[%s377 + $0x8] sm:$0xff]
        %v380 = vld [vmem:[%s377 + $0x10] sm:$0xff]
        %v381 = vpack.c.bf16 %v379, %v378
        %v382 = vpack.c.bf16 %v380, %v380
        %385 = vrot.lane.b32.xlu0 %v374, 4
        %v386 = vpop.permute.xlu0 %385
        %387 = vrot.lane.b32.xlu0 %v375, 4
        %v388 = vpop.permute.xlu0 %387
        %391 = vrot.lane.b32.xlu0 %v381, 8
        %v392 = vpop.permute.xlu0 %391
        %393 = vrot.lane.b32.xlu0 %v382, 8
        %v394 = vpop.permute.xlu0 %393
        %vm395 = vcmask 31744
        %v398 = vsel %vm395, %v367, %v386
        %v401 = vsel %vm395, %v368, %v388
        %vm402 = vcmask 64512
        %v404 = vsel %vm402, %v398, %v392
        %v406 = vsel %vm402, %v401, %v394
        %v407 = vld [vmem:[%s1] sm:$0xf]
        %v408 = vld [vmem:[%s1 + $0x4] sm:$0x3]
        %v411 = vunpack.c.l.b16 %v407
        %v412 = vunpack.c.l.b16 %v408
        %v413 = vpack.c.b16 %v412, %v411
        %vm414 = vcmask 97280
        %v415 = vsel %vm414, %v404, 0
        %v417 = vsel %vm414, %v406, 0
        %vm419 = vcmask 1045504
        %v421 = vsel %vm419, %v413, 0
        %423 = vmatprep.subr.bf16.mxu0 0
        %424 = vmatpush1.bf16.msra.mxu0 0
        %425 = vmatprep.subr.bf16.mxu0 0
        %426 = vmatpush1.bf16.msra.mxu0 0
        %427 = vmatprep.subr.bf16.mxu0 0
        %428 = vmatpush1.bf16.msra.mxu0 0
        %429 = vmatprep.subr.bf16.mxu0 0
        %430 = vmatpush1.bf16.msra.mxu0 0
        %431 = vmatprep.subr.bf16.mxu0 0
        %432 = vmatpush1.bf16.msra.mxu0 0
        %433 = vmatprep.subr.bf16.mxu0 0
        %434 = vmatpush1.bf16.msra.mxu0 0
        %435 = vmatprep.subr.bf16.mxu0 0
        %436 = vmatpush1.bf16.msra.mxu0 0
        %437 = vmatprep.subr.bf16.mxu0 0
        %438 = vmatpush1.bf16.msra.mxu0 %v421
        %439 = vmatprep.subr.bf16.mxu0 0
        %440 = vmatpush2.bf16.msra.mxu0 0
        %441 = vmatprep.subr.bf16.mxu0 0
        %442 = vmatpush2.bf16.msra.mxu0 0
        %443 = vmatprep.subr.bf16.mxu0 0
        %444 = vmatpush2.bf16.msra.mxu0 0
        %445 = vmatprep.subr.bf16.mxu0 0
        %446 = vmatpush2.bf16.msra.mxu0 0
        %447 = vmatprep.subr.bf16.mxu0 0
        %448 = vmatpush2.bf16.msra.mxu0 0
        %449 = vmatprep.subr.bf16.mxu0 0
        %450 = vmatpush2.bf16.msra.mxu0 0
        %451 = vmatprep.subr.bf16.mxu0 0
        %452 = vmatpush2.bf16.msra.mxu0 0
        %453 = vmatprep.subr.bf16.mxu0 0
        %454 = vmatpush2.bf16.msra.mxu0 0
        %455 = vmatprep.mubr.bf16.mxu0 0
        %456 = vmatmul.mubr.bf16.gmra.mxu0 %v415
        %v457 = vpop.f32.mrf.mxu0
        %v458 = vadd.f32 0.0, %v457
        %v459 = vpop.f32.mrf.mxu0
        %v460 = vpop.f32.mrf.mxu0
        %v461 = vadd.f32 0.0, %v460
        %v462 = vpop.f32.mrf.mxu0
        %463 = vmatprep.mubr.bf16.mxu0 0
        %464 = vmatmul.mubr.bf16.gmra.mxu0 %v417
        %v465 = vpop.f32.mrf.mxu0
        %v466 = vadd.f32 0.0, %v465
        %v467 = vpop.f32.mrf.mxu0
        %v468 = vpop.f32.mrf.mxu0
        %v469 = vpop.f32.mrf.mxu0
        %470 = vdwg.mxu0
        %v471 = vld [vmem:[%s3] sm:$0x1]
        %v473 = vlaneseq
        %v474 = vshrl.u32 %v473, 7
        %v475 = vsub.s32 0, %v474
        %v476 = vrot.slane %v471, %v475
        %v478 = vmul.f32 %v458, %v476
        %v479 = vmul.f32 %v461, %v476
        %v480 = vmul.f32 %v466, %v476
        %v481 = vld [vmem:[%s4] sm:$0x1]
        %v483 = vlaneseq
        %v484 = vshrl.u32 %v483, 7
        %v485 = vsub.s32 0, %v484
        %v486 = vrot.slane %v481, %v485
        %v488 = vadd.f32 %v478, %v486
        %v489 = vadd.f32 %v479, %v486
        %v490 = vadd.f32 %v480, %v486
        %v491 = vmax.f32 %v488, 0.0
        %v492 = vmax.f32 %v489, 0.0
        %v493 = vmax.f32 %v490, 0.0
        %v494 = vlaneseq
        %v495 = vshrl.u32 %v494, 7
        %v496 = vadd.s32 %v495, 8
        %v497 = vadd.s32 %v495, 16
        %s498 = ssub.s32 %s362, 2
        %v499 = vstv %s498
        %v500 = vadd.s32 %v499, %v495
        %v501 = vadd.s32 %v499, %v496
        %v502 = vadd.s32 %v499, %v497
        %vm503 = vcmp.ge.s32.totalorder %v500, 0
        %vm504 = vcmp.ge.s32.totalorder %v501, 0
        %vm505 = vcmp.ge.s32.totalorder %v502, 0
        %vm506 = vcmp.lt.s32.totalorder %v500, 16
        %vm507 = vcmp.lt.s32.totalorder %v501, 16
        %vm508 = vcmp.lt.s32.totalorder %v502, 16
        %vm509 = vmand %vm503, %vm506
        %vm510 = vmand %vm504, %vm507
        %vm511 = vmand %vm505, %vm508
        %v512 = vsel %vm509, 1, 0
        %v513 = vsel %vm510, 1, 0
        %v514 = vsel %vm511, 1, 0
        %vm515 = vcmp.eq.s32.totalorder %v512, 1
        %vm516 = vcmp.eq.s32.totalorder %v513, 1
        %vm517 = vcmp.eq.s32.totalorder %v514, 1
        %v518 = vsel %vm515, %v491, 0.0
        %v519 = vsel %vm516, %v492, 0.0
        %v520 = vsel %vm517, %v493, 0.0
        %v521 = vpack.c.bf16 %v519, %v518
        %v522 = vpack.c.bf16 %v520, %v520
        %vm525 = vcmask 1046528
        %v526 = vrot.slane %v521, 1
        %v527 = vrot.slane %v522, 1
        %v528 = vsel %vm525, %v526, %v527
        %vm530 = vcmask 1045504
        %v531 = vrot.slane %v521, 2
        %v532 = vrot.slane %v522, 2
        %v533 = vsel %vm530, %v531, %v532
        %v535 = vld [vmem:[#allocation2] sm:$0xf]
        %v536 = vld [vmem:[#allocation2 + $0x4] sm:$0xf]
        %v537 = vld [vmem:[#allocation2 + $0x8] sm:$0xf]
        %v538 = vld [vmem:[#allocation2 + $0xc] sm:$0xf]
        %v539 = vld [vmem:[#allocation2 + $0x10] sm:$0xf]
        %v540 = vld [vmem:[#allocation2 + $0x14] sm:$0xf]
        %v541 = vld [vmem:[#allocation2 + $0x18] sm:$0xf]
        %v542 = vld [vmem:[#allocation2 + $0x1c] sm:$0xf]
        %v543 = vld [vmem:[#allocation2 + $0x20] sm:$0xf]
        %v544 = vld [vmem:[#allocation2 + $0x24] sm:$0xf]
        %v545 = vld [vmem:[#allocation2 + $0x28] sm:$0xf]
        %v546 = vld [vmem:[#allocation2 + $0x2c] sm:$0xf]
        %v547 = vld [vmem:[#allocation2 + $0x30] sm:$0xf]
        %v548 = vld [vmem:[#allocation2 + $0x34] sm:$0xf]
        %v549 = vld [vmem:[#allocation2 + $0x38] sm:$0xf]
        %v550 = vld [vmem:[#allocation2 + $0x3c] sm:$0xf]
        %v551 = vld [vmem:[#allocation2 + $0x40] sm:$0xf]
        %v552 = vld [vmem:[#allocation2 + $0x44] sm:$0xf]
        %v553 = vld [vmem:[#allocation2 + $0x48] sm:$0xf]
        %v554 = vld [vmem:[#allocation2 + $0x4c] sm:$0xf]
        %v555 = vld [vmem:[#allocation2 + $0x50] sm:$0xf]
        %v556 = vld [vmem:[#allocation2 + $0x54] sm:$0xf]
        %v557 = vld [vmem:[#allocation2 + $0x58] sm:$0xf]
        %v558 = vld [vmem:[#allocation2 + $0x5c] sm:$0xf]
        %v559 = vld [vmem:[#allocation2 + $0x60] sm:$0xf]
        %v560 = vld [vmem:[#allocation2 + $0x64] sm:$0xf]
        %v561 = vld [vmem:[#allocation2 + $0x68] sm:$0xf]
        %v562 = vld [vmem:[#allocation2 + $0x6c] sm:$0xf]
        %v563 = vld [vmem:[#allocation2 + $0x70] sm:$0xf]
        %v564 = vld [vmem:[#allocation2 + $0x74] sm:$0xf]
        %v565 = vld [vmem:[#allocation2 + $0x78] sm:$0xf]
        %v566 = vld [vmem:[#allocation2 + $0x7c] sm:$0xf]
        %v567 = vld [vmem:[#allocation2 + $0x80] sm:$0xf]
        %v568 = vld [vmem:[#allocation2 + $0x84] sm:$0xf]
        %v569 = vld [vmem:[#allocation2 + $0x88] sm:$0xf]
        %v570 = vld [vmem:[#allocation2 + $0x8c] sm:$0xf]
        %v571 = vld [vmem:[#allocation2 + $0x90] sm:$0xf]
        %v572 = vld [vmem:[#allocation2 + $0x94] sm:$0xf]
        %v573 = vld [vmem:[#allocation2 + $0x98] sm:$0xf]
        %v574 = vld [vmem:[#allocation2 + $0x9c] sm:$0xf]
        %v575 = vld [vmem:[#allocation2 + $0xa0] sm:$0xf]
        %v576 = vld [vmem:[#allocation2 + $0xa4] sm:$0xf]
        %v577 = vld [vmem:[#allocation2 + $0xa8] sm:$0xf]
        %v578 = vld [vmem:[#allocation2 + $0xac] sm:$0xf]
        %v579 = vld [vmem:[#allocation2 + $0xb0] sm:$0xf]
        %v580 = vld [vmem:[#allocation2 + $0xb4] sm:$0xf]
        %v581 = vld [vmem:[#allocation2 + $0xb8] sm:$0xf]
        %v582 = vld [vmem:[#allocation2 + $0xbc] sm:$0xf]
        %v631 = vunpack.c.l.b16 %v535
        %v632 = vunpack.c.l.b16 %v536
        %v633 = vunpack.c.l.b16 %v537
        %v634 = vunpack.c.l.b16 %v538
        %v635 = vunpack.c.l.b16 %v539
        %v636 = vunpack.c.l.b16 %v540
        %v637 = vunpack.c.l.b16 %v541
        %v638 = vunpack.c.l.b16 %v542
        %v639 = vunpack.c.l.b16 %v543
        %v640 = vunpack.c.l.b16 %v544
        %v641 = vunpack.c.l.b16 %v545
        %v642 = vunpack.c.l.b16 %v546
        %v643 = vunpack.c.l.b16 %v547
        %v644 = vunpack.c.l.b16 %v548
        %v645 = vunpack.c.l.b16 %v549
        %v646 = vunpack.c.l.b16 %v550
        %v647 = vunpack.c.l.b16 %v551
        %v648 = vunpack.c.l.b16 %v552
        %v649 = vunpack.c.l.b16 %v553
        %v650 = vunpack.c.l.b16 %v554
        %v651 = vunpack.c.l.b16 %v555
        %v652 = vunpack.c.l.b16 %v556
        %v653 = vunpack.c.l.b16 %v557
        %v654 = vunpack.c.l.b16 %v558
        %v655 = vunpack.c.l.b16 %v559
        %v656 = vunpack.c.l.b16 %v560
        %v657 = vunpack.c.l.b16 %v561
        %v658 = vunpack.c.l.b16 %v562
        %v659 = vunpack.c.l.b16 %v563
        %v660 = vunpack.c.l.b16 %v564
        %v661 = vunpack.c.l.b16 %v565
        %v662 = vunpack.c.l.b16 %v566
        %v663 = vunpack.c.l.b16 %v567
        %v664 = vunpack.c.l.b16 %v568
        %v665 = vunpack.c.l.b16 %v569
        %v666 = vunpack.c.l.b16 %v570
        %v667 = vunpack.c.l.b16 %v571
        %v668 = vunpack.c.l.b16 %v572
        %v669 = vunpack.c.l.b16 %v573
        %v670 = vunpack.c.l.b16 %v574
        %v671 = vunpack.c.l.b16 %v575
        %v672 = vunpack.c.l.b16 %v576
        %v673 = vunpack.c.l.b16 %v577
        %v674 = vunpack.c.l.b16 %v578
        %v675 = vunpack.c.l.b16 %v579
        %v676 = vunpack.c.l.b16 %v580
        %v677 = vunpack.c.l.b16 %v581
        %v678 = vunpack.c.l.b16 %v582
        %v679 = vpack.c.b16 %v632, %v631
        %v680 = vpack.c.b16 %v634, %v633
        %v681 = vpack.c.b16 %v636, %v635
        %v682 = vpack.c.b16 %v638, %v637
        %v683 = vpack.c.b16 %v640, %v639
        %v684 = vpack.c.b16 %v642, %v641
        %v685 = vpack.c.b16 %v644, %v643
        %v686 = vpack.c.b16 %v646, %v645
        %v687 = vpack.c.b16 %v648, %v647
        %v688 = vpack.c.b16 %v650, %v649
        %v689 = vpack.c.b16 %v652, %v651
        %v690 = vpack.c.b16 %v654, %v653
        %v691 = vpack.c.b16 %v656, %v655
        %v692 = vpack.c.b16 %v658, %v657
        %v693 = vpack.c.b16 %v660, %v659
        %v694 = vpack.c.b16 %v662, %v661
        %v695 = vpack.c.b16 %v664, %v663
        %v696 = vpack.c.b16 %v666, %v665
        %v697 = vpack.c.b16 %v668, %v667
        %v698 = vpack.c.b16 %v670, %v669
        %v699 = vpack.c.b16 %v672, %v671
        %v700 = vpack.c.b16 %v674, %v673
        %v701 = vpack.c.b16 %v676, %v675
        %v702 = vpack.c.b16 %v678, %v677
        %727 = vmatprep.subr.bf16.mxu0 0
        %728 = vmatpush1.bf16.msra.mxu0 %v686
        %729 = vmatprep.subr.bf16.mxu0 0
        %730 = vmatpush1.bf16.msra.mxu0 %v685
        %731 = vmatprep.subr.bf16.mxu0 0
        %732 = vmatpush1.bf16.msra.mxu0 %v684
        %733 = vmatprep.subr.bf16.mxu0 0
        %734 = vmatpush1.bf16.msra.mxu0 %v683
        %735 = vmatprep.subr.bf16.mxu0 0
        %736 = vmatpush1.bf16.msra.mxu0 %v682
        %737 = vmatprep.subr.bf16.mxu0 0
        %738 = vmatpush1.bf16.msra.mxu0 %v681
        %739 = vmatprep.subr.bf16.mxu0 0
        %740 = vmatpush1.bf16.msra.mxu0 %v680
        %741 = vmatprep.subr.bf16.mxu0 0
        %742 = vmatpush1.bf16.msra.mxu0 %v679
        %743 = vmatprep.subr.bf16.mxu0 0
        %744 = vmatpush2.bf16.msra.mxu0 %v694
        %745 = vmatprep.subr.bf16.mxu0 0
        %746 = vmatpush2.bf16.msra.mxu0 %v693
        %747 = vmatprep.subr.bf16.mxu0 0
        %748 = vmatpush2.bf16.msra.mxu0 %v692
        %749 = vmatprep.subr.bf16.mxu0 0
        %750 = vmatpush2.bf16.msra.mxu0 %v691
        %751 = vmatprep.subr.bf16.mxu0 0
        %752 = vmatpush2.bf16.msra.mxu0 %v690
        %753 = vmatprep.subr.bf16.mxu0 0
        %754 = vmatpush2.bf16.msra.mxu0 %v689
        %755 = vmatprep.subr.bf16.mxu0 0
        %756 = vmatpush2.bf16.msra.mxu0 %v688
        %757 = vmatprep.subr.bf16.mxu0 0
        %758 = vmatpush2.bf16.msra.mxu0 %v687
        %759 = vmatprep.mubr.bf16.mxu0 %v528
        %760 = vmatmul.mubr.bf16.gmra.mxu0 %v521
        %v761 = vpop.f32.mrf.mxu0
        %v762 = vadd.f32 0.0, %v761
        %v763 = vpop.f32.mrf.mxu0
        %v764 = vpop.f32.mrf.mxu0
        %v765 = vadd.f32 0.0, %v764
        %v766 = vpop.f32.mrf.mxu0
        %767 = vdwg.mxu0
        %768 = vmatprep.subr.bf16.mxu0 0
        %769 = vmatpush1.bf16.msra.mxu0 %v702
        %770 = vmatprep.subr.bf16.mxu0 0
        %771 = vmatpush1.bf16.msra.mxu0 %v701
        %772 = vmatprep.subr.bf16.mxu0 0
        %773 = vmatpush1.bf16.msra.mxu0 %v700
        %774 = vmatprep.subr.bf16.mxu0 0
        %775 = vmatpush1.bf16.msra.mxu0 %v699
        %776 = vmatprep.subr.bf16.mxu0 0
        %777 = vmatpush1.bf16.msra.mxu0 %v698
        %778 = vmatprep.subr.bf16.mxu0 0
        %779 = vmatpush1.bf16.msra.mxu0 %v697
        %780 = vmatprep.subr.bf16.mxu0 0
        %781 = vmatpush1.bf16.msra.mxu0 %v696
        %782 = vmatprep.subr.bf16.mxu0 0
        %783 = vmatpush1.bf16.msra.mxu0 %v695
        %784 = vmatprep.subr.bf16.mxu0 0
        %785 = vmatpush2.bf16.msra.mxu0 0
        %786 = vmatprep.subr.bf16.mxu0 0
        %787 = vmatpush2.bf16.msra.mxu0 0
        %788 = vmatprep.subr.bf16.mxu0 0
        %789 = vmatpush2.bf16.msra.mxu0 0
        %790 = vmatprep.subr.bf16.mxu0 0
        %791 = vmatpush2.bf16.msra.mxu0 0
        %792 = vmatprep.subr.bf16.mxu0 0
        %793 = vmatpush2.bf16.msra.mxu0 0
        %794 = vmatprep.subr.bf16.mxu0 0
        %795 = vmatpush2.bf16.msra.mxu0 0
        %796 = vmatprep.subr.bf16.mxu0 0
        %797 = vmatpush2.bf16.msra.mxu0 0
        %798 = vmatprep.subr.bf16.mxu0 0
        %799 = vmatpush2.bf16.msra.mxu0 0
        %800 = vmatprep.mubr.bf16.mxu0 0
        %801 = vmatmul.mubr.bf16.gmra.mxu0 %v533
        %v802 = vpop.f32.mrf.mxu0
        %v803 = vadd.f32 %v762, %v802
        %v804 = vpop.f32.mrf.mxu0
        %v805 = vpop.f32.mrf.mxu0
        %v806 = vadd.f32 %v765, %v805
        %v807 = vpop.f32.mrf.mxu0
        %808 = vdwg.mxu0
        %v809 = vld [vmem:[%s5] sm:$0x1]
        %v811 = vlaneseq
        %v812 = vshrl.u32 %v811, 7
        %v813 = vsub.s32 0, %v812
        %v814 = vrot.slane %v809, %v813
        %v816 = vmul.f32 %v803, %v814
        %v817 = vmul.f32 %v806, %v814
        %v818 = vld [vmem:[%s6] sm:$0x1]
        %v820 = vlaneseq
        %v821 = vshrl.u32 %v820, 7
        %v822 = vsub.s32 0, %v821
        %v823 = vrot.slane %v818, %v822
        %v825 = vadd.f32 %v816, %v823
        %v826 = vadd.f32 %v817, %v823
        %v827 = vstv %s362
        %v828 = vadd.s32 %v827, %v495
        %v829 = vadd.s32 %v827, %v496
        %vm830 = vcmp.lt.s32.totalorder %v828, 16
        %vm831 = vcmp.lt.s32.totalorder %v829, 16
        %v832 = vsel %vm830, 1, 0
        %v833 = vsel %vm831, 1, 0
        %vm834 = vcmp.eq.s32.totalorder %v832, 1
        %vm835 = vcmp.eq.s32.totalorder %v833, 1
        %v836 = vsel %vm834, %v825, 0.0
        %v837 = vsel %vm835, %v826, 0.0
        %v838 = vld [vmem:[%s377] sm:$0xff]
        %v839 = vld [vmem:[%s377 + $0x8] sm:$0xff]
        %v840 = vpack.c.bf16 %v839, %v838
        %v841 = vld [vmem:[%s7] sm:$0x3]
        %v842 = vld [vmem:[%s8] sm:$0x1]
        %v844 = vlaneseq
        %v845 = vshrl.u32 %v844, 7
        %v846 = vsub.s32 0, %v845
        %v847 = vrot.slane %v842, %v846
        %v850 = vsel %vm395, %v840, 0
        %vm852 = vcmask 1041408
        %v854 = vsel %vm852, %v841, 0
        %856 = vmatprep.subr.bf16.mxu0 0
        %857 = vmatpush1.bf16.msra.mxu0 0
        %858 = vmatprep.subr.bf16.mxu0 0
        %859 = vmatpush1.bf16.msra.mxu0 0
        %860 = vmatprep.subr.bf16.mxu0 0
        %861 = vmatpush1.bf16.msra.mxu0 0
        %862 = vmatprep.subr.bf16.mxu0 0
        %863 = vmatpush1.bf16.msra.mxu0 0
        %864 = vmatprep.subr.bf16.mxu0 0
        %865 = vmatpush1.bf16.msra.mxu0 0
        %866 = vmatprep.subr.bf16.mxu0 0
        %867 = vmatpush1.bf16.msra.mxu0 0
        %868 = vmatprep.subr.bf16.mxu0 0
        %869 = vmatpush1.bf16.msra.mxu0 0
        %870 = vmatprep.subr.bf16.mxu0 0
        %871 = vmatpush1.bf16.msra.mxu0 %v854
        %872 = vmatprep.subr.bf16.mxu0 0
        %873 = vmatpush2.bf16.msra.mxu0 0
        %874 = vmatprep.subr.bf16.mxu0 0
        %875 = vmatpush2.bf16.msra.mxu0 0
        %876 = vmatprep.subr.bf16.mxu0 0
        %877 = vmatpush2.bf16.msra.mxu0 0
        %878 = vmatprep.subr.bf16.mxu0 0
        %879 = vmatpush2.bf16.msra.mxu0 0
        %880 = vmatprep.subr.bf16.mxu0 0
        %881 = vmatpush2.bf16.msra.mxu0 0
        %882 = vmatprep.subr.bf16.mxu0 0
        %883 = vmatpush2.bf16.msra.mxu0 0
        %884 = vmatprep.subr.bf16.mxu0 0
        %885 = vmatpush2.bf16.msra.mxu0 0
        %886 = vmatprep.subr.bf16.mxu0 0
        %887 = vmatpush2.bf16.msra.mxu0 0
        %888 = vmatprep.mubr.bf16.mxu0 0
        %889 = vmatmul.mubr.bf16.gmra.mxu0 %v850
        %v890 = vpop.f32.mrf.mxu0
        %v891 = vadd.f32 %v847, %v890
        %v892 = vpop.f32.mrf.mxu0
        %v893 = vpop.f32.mrf.mxu0
        %v894 = vadd.f32 %v847, %v893
        %v895 = vpop.f32.mrf.mxu0
        %896 = vdwg.mxu0
        %v897 = vsel %vm834, %v891, 0.0
        %v898 = vsel %vm835, %v894, 0.0
        %v899 = vadd.f32 %v836, %v897
        %v900 = vadd.f32 %v837, %v898
        %v901 = vmax.f32 %v899, 0.0
        %v902 = vmax.f32 %v900, 0.0
        %903 = vst [vmem:[%s354] sm:$0xff] %v901
        %904 = vst [vmem:[%s354 + $0x8] sm:$0xff] %v902
        %s905 = sand.u32 %s240, 1
        %s906 = scalar_lea.sflag [#allocation4], %s905
        %s907 = sand.u32 %s240, 1
        %s908 = smul.addr %s907, 16
        %s909 = scalar_lea.vmem [#allocation5], %s908
        // Predicated region
        $region61: #{tpu_custom_call.1} parent=55 // pred_check
          %p910 = pneg %p250
        $region62: #{tpu_custom_call.1} parent=55 // pred_check_branch
          %912 = sbr.rel (%p910) target = $region64
        $region63: #{tpu_custom_call.1} parent=55 // pred_region
          %s913 = smul.u32 2, %s29
          %s915 = ssub.s32 256, 256
          %916 = vsyncadd %s906, %s915
          %s917 = smul.addr %s28, 2
          %s918 = sadd.s32 %s913, %s917
          %s919 = smul.addr %s918, 128
          %s920 = scalar_lea.hbm %s9, %s919
          %s921 = sshll.u32 %s909, 4
          %s922 = int_to_ptr.vmem [resolvable:$true] %s921
          %927 = dma.vmem_to_hbm [thread:$0]  %s922, 256, %s920, %s906, 128, 128, 8
        $region64: #{tpu_custom_call.1} parent=55 // pred_fallthru
          _
      $region56: #{tpu_custom_call.1} parent=5 // pred_fallthru
        _
      %p928 = scmp.le.s32.totalorder 2, %s19
      // Predicated region
      $region65: #{tpu_custom_call.1} parent=5 // pred_check
        %p929 = pneg %p928
      $region66: #{tpu_custom_call.1} parent=5 // pred_check_branch
        %931 = sbr.rel (%p929) target = $region68
      $region67: #{tpu_custom_call.1} parent=5 // pred_region
        %s932 = ssub.s32 %s19, 2
        // Predicated region
        $region69: #{tpu_custom_call.1} parent=67 // pred_check
          %p933 = pneg %p256
        $region70: #{tpu_custom_call.1} parent=67 // pred_check_branch
          %935 = sbr.rel (%p933) target = $region72
        $region71: #{tpu_custom_call.1} parent=67 // pred_region
          %s936 = sand.u32 %s241, 1
          %s937 = scalar_lea.sflag [#allocation4], %s936
          %s938 = sand.u32 %s241, 1
          %s939 = smul.addr %s938, 16
          %s940 = scalar_lea.vmem [#allocation5], %s939
          %941 = dma.done %s937, 256
        $region72: #{tpu_custom_call.1} parent=67 // pred_fallthru
          _
      $region68: #{tpu_custom_call.1} parent=5 // pred_fallthru
        _
    $region6: #{tpu_custom_call.1} parent=1 // loop_footer
      %s23 = sadd.s32 1, %s19
    $region7: #{tpu_custom_call.1} parent=1 // loop_footer_branch
      %18 = sbr.rel target = $region3
    $region8: #{tpu_custom_call.1} parent=1 // loop_exit
      _
    %942 = vsyncpa [#allocation3], 1
    %s943 = scalar_lea.sflag [#allocation3], 1
    %944 = vsyncpa %s943, 1
    %945 = vsyncpa [#allocation4], 1
    %s946 = scalar_lea.sflag [#allocation4], 1
    %947 = vsyncpa %s946, 1

</llo_original>
